<compile_context>
chip_gen: v5e
topology: v5e:2x2
jax: 0.10.0
libtpu: 0.0.40
codegen_flags: <defaults>
</compile_context>

<pallas_src>
import math
import functools

import jax
import jax.numpy as jnp
from jax.experimental import pallas as pl
from jax.experimental.pallas import tpu as pltpu


# ----------------------------- PE buffer (init) ------------------------------

def make_pos_encoding(max_len, dim_model):
    """Identical formula to PositionalEncoding.__init__ (register_buffer)."""
    positions = jnp.arange(max_len, dtype=jnp.float32)[:, None]
    division_term = jnp.exp(
        jnp.arange(0, dim_model, 2, dtype=jnp.float32)
        * (-math.log(10000.0) / dim_model))
    pe = jnp.zeros((max_len, dim_model), jnp.float32)
    pe = pe.at[:, 0::2].set(jnp.sin(positions * division_term))
    pe = pe.at[:, 1::2].set(jnp.cos(positions * division_term))
    return pe


# ------------------------------- Pallas kernel -------------------------------

def _pe_add_kernel(x_ref, pe_ref, o_ref):
    # x block: (1, ts, D); pe block: (ts, D) -> broadcast add over the batch dim.
    o_ref[...] = x_ref[...] + pe_ref[...]


def _pick_seq_tile(S, max_tile):
    """Largest multiple-of-8 tile <= max_tile that divides S, else the full S.

    (A block's second-to-last dim must be a multiple of 8 or equal the full
    array dim; using a divisor of S avoids ragged edge blocks.)
    """
    if S <= max_tile:
        return S
    ts = (max_tile // 8) * 8
    while ts >= 8:
        if S % ts == 0:
            return ts
        ts -= 8
    return S


def positional_encoding_forward(x, pe, *, dropout_p=0.0, seq_tile=512):
    """dropout(x + pe[:S, :]) with x: (B, S, D) float32, pe: (max_len, D)."""
    # TODO(synk): training-mode dropout (dropout_p > 0) is not implemented; this
    # matches nn.Dropout in eval mode / dropout_p == 0 (deterministic forward).
    del dropout_p

    B, S, D = x.shape
    assert pe.shape[0] >= S and pe.shape[1] == D, (x.shape, pe.shape)

    ts = _pick_seq_tile(S, seq_tile)
    grid = (B, S // ts)

    return pl.pallas_call(
        _pe_add_kernel,
        out_shape=jax.ShapeDtypeStruct((B, S, D), jnp.float32),
        grid=grid,
        in_specs=[
            pl.BlockSpec((1, ts, D), lambda b, s: (b, s, 0)),   # activations
            pl.BlockSpec((ts, D), lambda b, s: (s, 0)),         # PE rows (shared over batch)
        ],
        out_specs=pl.BlockSpec((1, ts, D), lambda b, s: (b, s, 0)),
        compiler_params=pltpu.CompilerParams(
            dimension_semantics=("parallel", "parallel")),
    )(x.astype(jnp.float32), pe.astype(jnp.float32))


# ----------------------------------- main ------------------------------------

if __name__ == "__main__":
    B, S, D = 2, 16, 32          # batch=2, seq=16, dim_model=32
    MAX_LEN = 4096
    DROPOUT_P = 0.0              # eval-mode / deterministic

    key = jax.random.PRNGKey(0)
    token_embedding = jax.random.normal(key, (B, S, D), dtype=jnp.float32)

    pe = make_pos_encoding(MAX_LEN, D)

    # seq_tile=8 so the toy shape actually exercises a multi-step, pipelined grid.
    fwd = jax.jit(functools.partial(positional_encoding_forward,
                                    dropout_p=DROPOUT_P, seq_tile=8))
    out = fwd(token_embedding, pe)
    out = jax.block_until_ready(out)

    # Reference (plain JAX) check of the forward semantics.
    ref = token_embedding + pe[:S, :][None, :, :]
    assert out.shape == (B, S, D), out.shape
    assert bool(jnp.all(jnp.isfinite(out)))
    assert bool(jnp.allclose(out, ref, atol=1e-6, rtol=1e-6))
    print("KERNEL_OK")
</pallas_src>

<mosaic_0001>
module attributes {stable_mosaic.version = 11 : i64} {
  func.func @_pe_add_kernel(%arg0: i32, %arg1: i32, %arg2: memref<1x8x32xf32, #tpu.memory_space<vmem>>, %arg3: memref<8x32xf32, #tpu.memory_space<vmem>>, %arg4: memref<1x8x32xf32, #tpu.memory_space<vmem>>) attributes {dimension_semantics = [#tpu.dimension_semantics<parallel>, #tpu.dimension_semantics<parallel>], iteration_bounds = array<i64: 2, 2>, scalar_prefetch = 0 : i64, scratch_operands = 0 : i64, tpu.core_type = #tpu.core_type<tc>, window_params = [{transform_indices = @transform_0, window_bounds = array<i64: 1, 8, 32>}, {transform_indices = @transform_1, window_bounds = array<i64: 8, 32>}, {transform_indices = @transform_2, window_bounds = array<i64: 1, 8, 32>}]} {
    %c0 = arith.constant 0 : index
    %c0_0 = arith.constant 0 : index
    %c0_1 = arith.constant 0 : index
    %0 = vector.load %arg2[%c0, %c0_0, %c0_1] : memref<1x8x32xf32, #tpu.memory_space<vmem>>, vector<1x8x32xf32>
    %c0_2 = arith.constant 0 : index
    %c0_3 = arith.constant 0 : index
    %1 = vector.load %arg3[%c0_2, %c0_3] : memref<8x32xf32, #tpu.memory_space<vmem>>, vector<8x32xf32>
    %2 = vector.shape_cast %1 : vector<8x32xf32> to vector<1x8x32xf32>
    %3 = arith.addf %0, %2 : vector<1x8x32xf32>
    %c0_4 = arith.constant 0 : index
    %c0_5 = arith.constant 0 : index
    %c0_6 = arith.constant 0 : index
    %4 = vector.load %arg4[%c0_4, %c0_5, %c0_6] : memref<1x8x32xf32, #tpu.memory_space<vmem>>, vector<1x8x32xf32>
    tpu.vector_store %arg4[%c0_4, %c0_5, %c0_6], %3 {strides = array<i32>} : memref<1x8x32xf32, #tpu.memory_space<vmem>>, vector<1x8x32xf32>,
    return
  }
  func.func @transform_0(%arg0: i32, %arg1: i32) -> (i32, i32, i32) {
    %c0_i32 = arith.constant 0 : i32
    %c0_i32_0 = arith.constant 0 : i32
    return %arg0, %arg1, %c0_i32 : i32, i32, i32
  }
  func.func @transform_1(%arg0: i32, %arg1: i32) -> (i32, i32) {
    %c0_i32 = arith.constant 0 : i32
    %c0_i32_0 = arith.constant 0 : i32
    return %arg1, %c0_i32 : i32, i32
  }
  func.func @transform_2(%arg0: i32, %arg1: i32) -> (i32, i32, i32) {
    %c0_i32 = arith.constant 0 : i32
    %c0_i32_0 = arith.constant 0 : i32
    return %arg0, %arg1, %c0_i32 : i32, i32, i32
  }
}

</mosaic_0001>

<llo_original>
// kernel: positional_encoding_forward.1
$region0: #{positional_encoding_forward.1}
  #allocation0 [shape = 'u32[]', space=smem, size = 0x4, offset = 0x4, fixed_abs, tag = 'smem constant byte address 0x4 - core index']
  #allocation1 [shape = 'u32[72,128]{1,0:T(1,128)}', space=vmem, size = 0x9000, scoped, tag = 'internal scratch']
  %s0 = inlined_call_operand.vmem [shape: f32[2,16,32], index: 0, kind: input, shape index: {}]
  %s1 = inlined_call_operand.vmem [shape: f32[4096,32], index: 1, kind: input, shape index: {}]
  %s2 = inlined_call_operand.hbm [shape: f32[2,16,32], index: 2, kind: output, shape index: {}]
  %s3 = sld [smem:[#allocation0]]
  $region41: #{positional_encoding_forward.1} parent=0
    _
  %s5 = ssub.s32 1, %s3
  %s6 = scalar_select 0, %s5, %s3
  $region1: #{positional_encoding_forward.1} parent=0
    #allocation2 [shape = 'u8[8192]{0}', space=vmem, size = 0x2000, scoped, tag = 'output window, operand 0']
    #allocation3 [shape = 's32[2]{0}', space=sflag, size = 0x8, scoped, tag = 'scoped memory for positional_encoding_forward.1']
    %7 = vsyncpa [#allocation3], 0
    %s8 = scalar_lea.sflag [#allocation3], 1
    %9 = vsyncpa %s8, 0
    loop: start=0, step=1, limit=6
    $region2: #{positional_encoding_forward.1} parent=1 // loop_pre_header
      _
    $region3: #{positional_encoding_forward.1} parent=1 // loop_header
      %s11 = sphi 0, %s15
      %p12 = scmp.ge.s32.totalorder %s11, 6
      %s18 = sphi 0, %s30
      %s19 = sphi 0, %s26
      %s20 = sphi 0, %s18
      %s21 = sphi 0, %s19
      %s22 = sphi 0, %s20
      %s23 = sphi 0, %s21
      %s35 = sphi 0, %s37
      %s38 = sphi 0, %s35
      %s39 = sphi 0, %s38
      %s55 = sphi 0, %s39
      %s61 = sphi 0, %s63
      %s64 = sphi 0, %s61
      %s65 = sphi 0, %s64
      %s81 = sphi 0, %s65
      %s89 = sphi 0, %s91
      %s92 = sphi 0, %s89
      %s93 = sphi 0, %s92
      %s109 = sphi 0, %s93
    $region4: #{positional_encoding_forward.1} parent=1 // loop_header_branch
      %14 = sbr.rel (%p12) target = $region8
    $region5: #{positional_encoding_forward.1} parent=1 // loop_body
      %s16 = ssub.s32 %s11, 1
      %s17 = ssub.s32 %s11, 2
      %s24 = sadd.s32 1, %s19
      %p25 = scmp.ge.s32.totalorder %s24, 2
      %s26 = scalar_select %p25, 0, %s24
      %s27 = sadd.s32 1, %s18
      %s28 = scalar_select %p25, %s27, %s18
      %p29 = scmp.ge.s32.totalorder %s28, 2
      %s30 = scalar_select %p29, 0, %s28
      %s31 = ssub.s32 %s18, %s30
      %s32 = ssub.s32 %s19, %s26
      %s33 = sor.u32 %s31, %s32
      %p34 = scmp.eq.s32.totalorder %s33, 0
      %s36 = sadd.s32 %s35, 1
      %s37 = scalar_select %p34, %s35, %s36
      %p40 = pneg %p34
      %p41 = scmp.eq.s32.totalorder %s11, 3
      %p42 = por %p40, %p41
      %p43 = scmp.ne.s32.totalorder %s35, %s38
      %p44 = scmp.eq.s32.totalorder %s11, 0
      %p45 = por %p43, %p44
      %p46 = scmp.ne.s32.totalorder %s35, %s38
      %p47 = scmp.eq.s32.totalorder %s16, 3
      %p48 = por %p46, %p47
      %p49 = scmp.ne.s32.totalorder %s38, %s39
      %p50 = scmp.eq.s32.totalorder %s16, 0
      %p51 = por %p49, %p50
      %p52 = scmp.ne.s32.totalorder %s38, %s39
      %p53 = scmp.eq.s32.totalorder %s17, 3
      %p54 = por %p52, %p53
      %p56 = scmp.ne.s32.totalorder %s39, %s55
      %p57 = scmp.eq.s32.totalorder %s17, 0
      %p58 = por %p56, %p57
      %s59 = ssub.s32 %s19, %s26
      %p60 = scmp.eq.s32.totalorder %s59, 0
      %s62 = sadd.s32 %s61, 1
      %s63 = scalar_select %p60, %s61, %s62
      %p66 = pneg %p60
      %p67 = scmp.eq.s32.totalorder %s11, 3
      %p68 = por %p66, %p67
      %p69 = scmp.ne.s32.totalorder %s61, %s64
      %p70 = scmp.eq.s32.totalorder %s11, 0
      %p71 = por %p69, %p70
      %p72 = scmp.ne.s32.totalorder %s61, %s64
      %p73 = scmp.eq.s32.totalorder %s16, 3
      %p74 = por %p72, %p73
      %p75 = scmp.ne.s32.totalorder %s64, %s65
      %p76 = scmp.eq.s32.totalorder %s16, 0
      %p77 = por %p75, %p76
      %p78 = scmp.ne.s32.totalorder %s64, %s65
      %p79 = scmp.eq.s32.totalorder %s17, 3
      %p80 = por %p78, %p79
      %p82 = scmp.ne.s32.totalorder %s65, %s81
      %p83 = scmp.eq.s32.totalorder %s17, 0
      %p84 = por %p82, %p83
      %s85 = ssub.s32 %s18, %s30
      %s86 = ssub.s32 %s19, %s26
      %s87 = sor.u32 %s85, %s86
      %p88 = scmp.eq.s32.totalorder %s87, 0
      %s90 = sadd.s32 %s89, 1
      %s91 = scalar_select %p88, %s89, %s90
      %p94 = pneg %p88
      %p95 = scmp.eq.s32.totalorder %s11, 3
      %p96 = por %p94, %p95
      %p97 = scmp.ne.s32.totalorder %s89, %s92
      %p98 = scmp.eq.s32.totalorder %s11, 0
      %p99 = por %p97, %p98
      %p100 = scmp.ne.s32.totalorder %s89, %s92
      %p101 = scmp.eq.s32.totalorder %s16, 3
      %p102 = por %p100, %p101
      %p103 = scmp.ne.s32.totalorder %s92, %s93
      %p104 = scmp.eq.s32.totalorder %s16, 0
      %p105 = por %p103, %p104
      %p106 = scmp.ne.s32.totalorder %s92, %s93
      %p107 = scmp.eq.s32.totalorder %s17, 3
      %p108 = por %p106, %p107
      %p110 = scmp.ne.s32.totalorder %s93, %s109
      %p111 = scmp.eq.s32.totalorder %s17, 0
      %p112 = por %p110, %p111
      %p113 = scmp.le.s32.totalorder 1, %s11
      %p114 = scmp.lt.s32.totalorder %s11, 5
      %p115 = pnand %p113, %p114
      %p116 = pneg %p115
      // Predicated region
      $region9: #{positional_encoding_forward.1} parent=5 // pred_check
        _
      $region10: #{positional_encoding_forward.1} parent=5 // pred_check_branch
        %118 = sbr.rel (%p115) target = $region12
      $region11: #{positional_encoding_forward.1} parent=5 // pred_region
        %s119 = ssub.s32 %s11, 1
      $region12: #{positional_encoding_forward.1} parent=5 // pred_fallthru
        _
      %p120 = scmp.lt.s32.totalorder %s11, 4
      // Predicated region
      $region13: #{positional_encoding_forward.1} parent=5 // pred_check
        %p121 = pneg %p120
      $region14: #{positional_encoding_forward.1} parent=5 // pred_check_branch
        %123 = sbr.rel (%p121) target = $region16
      $region15: #{positional_encoding_forward.1} parent=5 // pred_region
        // Predicated region
        $region17: #{positional_encoding_forward.1} parent=15 // pred_check
          %p124 = pneg %p45
        $region18: #{positional_encoding_forward.1} parent=15 // pred_check_branch
          %126 = sbr.rel (%p124) target = $region20
        $region19: #{positional_encoding_forward.1} parent=15 // pred_region
          %p127 = scmp.lt.s32.totalorder %s18, 1
          %s128 = scalar_select %p127, %s18, 1
          %p129 = scmp.lt.s32.totalorder %s19, 1
          %s130 = scalar_select %p129, %s19, 1
          %s131 = smul.addr %s128, 2
          %s132 = sadd.s32 %s130, %s131
          %s133 = smul.addr %s132, 8
          %s134 = scalar_lea.vmem %s0, %s133
        $region20: #{positional_encoding_forward.1} parent=15 // pred_fallthru
          _
        // Predicated region
        $region21: #{positional_encoding_forward.1} parent=15 // pred_check
          %p135 = pneg %p71
        $region22: #{positional_encoding_forward.1} parent=15 // pred_check_branch
          %137 = sbr.rel (%p135) target = $region24
        $region23: #{positional_encoding_forward.1} parent=15 // pred_region
          %p138 = scmp.lt.s32.totalorder %s19, 511
          %s139 = scalar_select %p138, %s19, 511
          %s140 = smul.addr %s139, 8
          %s141 = scalar_lea.vmem %s1, %s140
        $region24: #{positional_encoding_forward.1} parent=15 // pred_fallthru
          _
      $region16: #{positional_encoding_forward.1} parent=5 // pred_fallthru
        _
      %p142 = scmp.le.s32.totalorder 1, %s11
      %p143 = scmp.lt.s32.totalorder %s11, 5
      %p144 = pnand %p142, %p143
      %p145 = pneg %p144
      // Predicated region
      $region25: #{positional_encoding_forward.1} parent=5 // pred_check
        _
      $region26: #{positional_encoding_forward.1} parent=5 // pred_check_branch
        %147 = sbr.rel (%p144) target = $region28
      $region27: #{positional_encoding_forward.1} parent=5 // pred_region
        %s148 = ssub.s32 %s11, 1
        %p149 = scmp.lt.s32.totalorder %s20, 1
        %s150 = scalar_select %p149, %s20, 1
        %p151 = scmp.lt.s32.totalorder %s21, 1
        %s152 = scalar_select %p151, %s21, 1
        %s153 = smul.addr %s150, 2
        %s154 = sadd.s32 %s152, %s153
        %s155 = smul.addr %s154, 8
        %s156 = scalar_lea.vmem %s0, %s155
        %p157 = pneg %p51
        %p158 = pneg %p48
        %p159 = scmp.lt.s32.totalorder %s21, 511
        %s160 = scalar_select %p159, %s21, 511
        %s161 = smul.addr %s160, 8
        %s162 = scalar_lea.vmem %s1, %s161
        %p163 = pneg %p77
        %p164 = pneg %p74
        %p165 = pneg %p105
        %p166 = pneg %p102
        %s167 = sand.u32 %s92, 1
        %s168 = scalar_lea.sflag [#allocation3], %s167
        %s169 = sand.u32 %s92, 1
        %s170 = smul.addr %s169, 8
        %s171 = scalar_lea.vmem [#allocation2], %s170
        %p172 = scmp.lt.s32.totalorder %s20, 1
        %s173 = scalar_select %p172, %s20, 1
        %p174 = scmp.lt.s32.totalorder %s21, 1
        %s175 = scalar_select %p174, %s21, 1
        %s176 = smul.addr %s173, 2
        %s177 = sadd.s32 %s175, %s176
        %s178 = smul.addr %s177, 8
        %s179 = scalar_lea.vmem %s0, %s178
        %p180 = scmp.lt.s32.totalorder %s21, 511
        %s181 = scalar_select %p180, %s21, 511
        %s182 = smul.addr %s181, 8
        %s183 = scalar_lea.vmem %s1, %s182
        %v184 = vld [vmem:[%s179] sm:$0xff]
        %v185 = vld [vmem:[%s183] sm:$0xff]
        %v186 = vadd.f32 %v184, %v185
        %vm187 = vcmask 261120
        %188 = vst.msk [vmem:[%s171] sm:$0xff] %vm187, %v186
        %s189 = sand.u32 %s92, 1
        %s190 = scalar_lea.sflag [#allocation3], %s189
        %s191 = sand.u32 %s92, 1
        %s192 = smul.addr %s191, 8
        %s193 = scalar_lea.vmem [#allocation2], %s192
        // Predicated region
        $region29: #{positional_encoding_forward.1} parent=27 // pred_check
          %p194 = pneg %p102
        $region30: #{positional_encoding_forward.1} parent=27 // pred_check_branch
          %196 = sbr.rel (%p194) target = $region32
        $region31: #{positional_encoding_forward.1} parent=27 // pred_region
          %198 = vsyncadd %s190, 0
          %s199 = smul.addr %s20, 2
          %s200 = sadd.s32 %s21, %s199
          %s201 = smul.addr %s200, 8
          %s202 = scalar_lea.hbm %s2, %s201
          %s204 = sshll.u32 %s193, 4
          %s205 = int_to_ptr.vmem [resolvable:$true] %s204
          %s206 = sshll.u32 %s202, 4
          %s207 = int_to_ptr.hbm [resolvable:$true] %s206
          %209 = dma.vmem_to_hbm [thread:$0]  %s205, 128, %s207, %s190
        $region32: #{positional_encoding_forward.1} parent=27 // pred_fallthru
          _
      $region28: #{positional_encoding_forward.1} parent=5 // pred_fallthru
        _
      %p210 = scmp.le.s32.totalorder 2, %s11
      // Predicated region
      $region33: #{positional_encoding_forward.1} parent=5 // pred_check
        %p211 = pneg %p210
      $region34: #{positional_encoding_forward.1} parent=5 // pred_check_branch
        %213 = sbr.rel (%p211) target = $region36
      $region35: #{positional_encoding_forward.1} parent=5 // pred_region
        %s214 = ssub.s32 %s11, 2
        // Predicated region
        $region37: #{positional_encoding_forward.1} parent=35 // pred_check
          %p215 = pneg %p108
        $region38: #{positional_encoding_forward.1} parent=35 // pred_check_branch
          %217 = sbr.rel (%p215) target = $region40
        $region39: #{positional_encoding_forward.1} parent=35 // pred_region
          %s218 = sand.u32 %s93, 1
          %s219 = scalar_lea.sflag [#allocation3], %s218
          %s220 = sand.u32 %s93, 1
          %s221 = smul.addr %s220, 8
          %s222 = scalar_lea.vmem [#allocation2], %s221
          %224 = dma.done %s219, 128
        $region40: #{positional_encoding_forward.1} parent=35 // pred_fallthru
          _
      $region36: #{positional_encoding_forward.1} parent=5 // pred_fallthru
        _
    $region6: #{positional_encoding_forward.1} parent=1 // loop_footer
      %s15 = sadd.s32 1, %s11
    $region7: #{positional_encoding_forward.1} parent=1 // loop_footer_branch
      %10 = sbr.rel target = $region3
    $region8: #{positional_encoding_forward.1} parent=1 // loop_exit
      _
    %225 = vsyncpa [#allocation3], 1
    %s226 = scalar_lea.sflag [#allocation3], 1
    %227 = vsyncpa %s226, 1

</llo_original>
